<compile_context>
chip_gen: v7x
topology: tpu7x:2x2x1
jax: 0.10.0
libtpu: 0.0.40
codegen_flags: <defaults>
</compile_context>

<pallas_src>
import functools
import numpy as np
import jax
import jax.numpy as jnp
from jax.experimental import pallas as pl
from jax.experimental.pallas import tpu as pltpu


def _round_up(x, m):
    return (x + m - 1) // m * m


# ----------------------------- Pallas kernel --------------------------------
def _rx_matmul_kernel(s_ref, m_ref, o_ref):
    # s_ref: (tm, W) interleaved state rows; m_ref: (W, W) embedded gate matrix
    # o_ref: (tm, W) interleaved output rows — single lane-dense MXU matmul.
    o_ref[...] = jnp.dot(s_ref[...], m_ref[...],
                         preferred_element_type=jnp.float32)


def _rx_apply_pallas(s_inter, m_inter, *, max_row_tile=1024,
                     vmem_budget=48 * 1024 * 1024):
    """s_inter: (B, 2N) f32 interleaved, m_inter: (2N, 2N) f32 -> (B, 2N) f32."""
    b, k2 = s_inter.shape

    # Lane densification: fold G row-groups into the lane dim when 2N < 128 and
    # replicate M block-diagonally, so stores are unmasked and MXU feeds are
    # >=128 lanes wide. (k2 is a power of two, so it divides 128 when smaller.)
    g = max(1, 128 // k2) if k2 < 128 else 1

    # Pad rows only for the fold / the 8-sublane minimum (tiny or zero cost;
    # no pad is emitted when B is already divisible and >= 8*g).
    b_pad = max(_round_up(b, g), 8 * g)
    if b_pad != b:
        s_inter = jnp.pad(s_inter, ((0, b_pad - b), (0, 0)))
    rows = b_pad // g
    width = g * k2
    s_folded = s_inter.reshape(rows, width)
    m_big = jnp.kron(jnp.eye(g, dtype=jnp.float32), m_inter) if g > 1 else m_inter

    # Row tile: big tiles (mem-bound kernel), but split into >=2 grid steps for
    # large problems so both TensorCores are used on v7x ("parallel" axis).
    tm = min(max_row_tile, _round_up((rows + 1) // 2, 8))

    # Explicit VMEM budget: S + out double-buffered tiles; the gate matrix is
    # resident (constant index_map) and single-buffered when it is large.
    m_bytes = width * width * 4
    single_buffer_m = m_bytes >= (8 << 20)
    m_bufs = 1 if single_buffer_m else 2
    while tm > 8 and 4 * tm * width * 4 + m_bufs * m_bytes > vmem_budget:
        tm = max(8, _round_up(tm // 2, 8))
    vmem_limit = int(min(max(4 * tm * width * 4 + m_bufs * m_bytes + (2 << 20),
                             32 << 20), 64 << 20))

    m_spec_kwargs = {}
    if single_buffer_m:
        # Constant index_map -> never re-DMAs; one buffer frees VMEM for rows.
        m_spec_kwargs["pipeline_mode"] = pl.Buffered(1)

    out = pl.pallas_call(
        _rx_matmul_kernel,
        out_shape=jax.ShapeDtypeStruct((rows, width), jnp.float32),
        grid=(pl.cdiv(rows, tm),),          # ragged last tile handled by Pallas
        in_specs=[
            pl.BlockSpec((tm, width), lambda i: (i, 0)),              # state rows
            pl.BlockSpec((width, width), lambda i: (0, 0), **m_spec_kwargs),
        ],
        out_specs=pl.BlockSpec((tm, width), lambda i: (i, 0)),
        compiler_params=pltpu.CompilerParams(
            dimension_semantics=("parallel",),
            vmem_limit_bytes=vmem_limit),
        cost_estimate=pl.CostEstimate(
            flops=2 * rows * width * width,
            bytes_accessed=2 * rows * width * 4 + width * width * 4,
            transcendentals=0),
    )(s_folded, m_big)

    out = out.reshape(b_pad, k2)
    return out[:b] if b_pad != b else out


# ----------------------------- glue (plain JAX) ------------------------------
def kron_power(mat, n):
    """n-fold Kronecker power of a 2x2 matrix (mirrors krons of repeated Rx)."""
    out = mat
    for _ in range(n - 1):
        out = jnp.kron(out, mat)
    return out


@functools.partial(jax.jit, static_argnums=(2,))
def rx_layer_forward(state, weights, n_qubits):
    """
    state:   (batch, n_blocks, 2**n_qubits, 1) complex64
    weights: scalar rotation angle (float32)
    returns: (batch, n_blocks, 2**n_qubits, 1) complex64
    """
    a = jnp.cos(weights / 2.0).astype(jnp.float32)
    b = jnp.sin(weights / 2.0).astype(jnp.float32)
    eye2 = jnp.eye(2, dtype=jnp.float32)
    x2 = jnp.array([[0.0, 1.0], [1.0, 0.0]], dtype=jnp.float32)
    # Rx = a*I - 1j*b*X  ->  real = a*I, imag = -b*X
    rx = (a * eye2).astype(jnp.complex64) - 1j * (b * x2).astype(jnp.complex64)
    u = kron_power(rx, n_qubits)                   # (N, N) complex64, symmetric

    ur = jnp.real(u).astype(jnp.float32)           # U^T == U: no transpose needed
    ui = jnp.imag(u).astype(jnp.float32)
    dim = 2 ** n_qubits
    k2 = 2 * dim
    # Interleaved real embedding of right-multiplication by U:
    #   input rows (2k, 2k+1) = (re_k, im_k); output cols (2j, 2j+1) = (re_j, im_j)
    m_inter = jnp.stack(
        [jnp.stack([ur, ui], axis=-1),             # real-part input rows
         jnp.stack([-ui, ur], axis=-1)],           # imag-part input rows
        axis=1).reshape(k2, k2)                    # (N,2,N,2) -> (2N, 2N) f32

    batch, n_blocks, d, one = state.shape
    s_flat = state.reshape(batch * n_blocks, d)    # (B, N) complex64
    # complex64 -> interleaved float32 view (native memory layout): no pack.
    s_inter = s_flat.view(jnp.float32)             # (B, 2N) f32

    out_inter = _rx_apply_pallas(s_inter, m_inter)  # (B, 2N) f32, interleaved
    out = out_inter.view(jnp.complex64)             # (B, N) complex64, no unpack
    return out.reshape(batch, n_blocks, d, one)


# ----------------------------------- main ------------------------------------
if __name__ == "__main__":
    key = jax.random.PRNGKey(0)
    k_w, k_sr, k_si = jax.random.split(key, 3)

    n_blocks = 3
    n_qubits = 4                       # 2^4 = 16 dimensional qubit state
    batch = 2
    dim = 2 ** n_qubits

    # deterministic parameter init: scalar angle drawn in weights_spread
    weights_spread = (-np.pi / 2, np.pi / 2)
    weights = jax.random.uniform(
        k_w, (), minval=weights_spread[0], maxval=weights_spread[1],
        dtype=jnp.float32)

    # deterministic complex input state: batch x blocks x 2^n x 1
    state_r = jax.random.normal(k_sr, (batch, n_blocks, dim, 1), dtype=jnp.float32)
    state_i = jax.random.normal(k_si, (batch, n_blocks, dim, 1), dtype=jnp.float32)
    state = (state_r + 1j * state_i).astype(jnp.complex64)

    out = rx_layer_forward(state, weights, n_qubits)
    out = jax.block_until_ready(out)

    # reference check in plain JAX (U @ state with broadcasting, like torch.matmul)
    a = jnp.cos(weights / 2.0)
    b = jnp.sin(weights / 2.0)
    rx = (a * jnp.eye(2)).astype(jnp.complex64) - 1j * (
        b * jnp.array([[0.0, 1.0], [1.0, 0.0]])).astype(jnp.complex64)
    u_ref = kron_power(rx, n_qubits)
    ref = jnp.matmul(u_ref, state)
    np.testing.assert_allclose(np.asarray(out), np.asarray(ref), rtol=1e-5, atol=1e-5)

    print("KERNEL_OK")
</pallas_src>

<mosaic_0001>
module attributes {stable_mosaic.version = 11 : i64} {
  func.func @_rx_matmul_kernel(%arg0: i32, %arg1: memref<8x128xf32, #tpu.memory_space<vmem>>, %arg2: memref<128x128xf32, #tpu.memory_space<vmem>>, %arg3: memref<8x128xf32, #tpu.memory_space<vmem>>) attributes {dimension_semantics = [#tpu.dimension_semantics<parallel>], iteration_bounds = array<i64: 1>, scalar_prefetch = 0 : i64, scratch_operands = 0 : i64, tpu.core_type = #tpu.core_type<tc>, window_params = [{transform_indices = @transform_0, window_bounds = array<i64: 8, 128>}, {pipeline_mode = #tpu.pipeline_mode<synchronous>, transform_indices = @transform_1, window_bounds = array<i64: 128, 128>}, {transform_indices = @transform_2, window_bounds = array<i64: 8, 128>}]} {
    %c0 = arith.constant 0 : index
    %c0_0 = arith.constant 0 : index
    %0 = vector.load %arg1[%c0, %c0_0] : memref<8x128xf32, #tpu.memory_space<vmem>>, vector<8x128xf32>
    %c0_1 = arith.constant 0 : index
    %c0_2 = arith.constant 0 : index
    %1 = vector.load %arg2[%c0_1, %c0_2] : memref<128x128xf32, #tpu.memory_space<vmem>>, vector<128x128xf32>
    %cst = arith.constant dense<0.000000e+00> : vector<8x128xf32>
    %2 = tpu.matmul %0, %1, %cst {dimension_numbers = #tpu.dot_dimension_numbers<[1], [0], [0], [1], [0, 0, 1, 1], [], []>} : vector<8x128xf32>, vector<128x128xf32>, vector<8x128xf32> -> vector<8x128xf32>
    %c0_3 = arith.constant 0 : index
    %c0_4 = arith.constant 0 : index
    %3 = vector.load %arg3[%c0_3, %c0_4] : memref<8x128xf32, #tpu.memory_space<vmem>>, vector<8x128xf32>
    tpu.vector_store %arg3[%c0_3, %c0_4], %2 {strides = array<i32>} : memref<8x128xf32, #tpu.memory_space<vmem>>, vector<8x128xf32>,
    return
  }
  func.func @transform_0(%arg0: i32) -> (i32, i32) {
    %c0_i32 = arith.constant 0 : i32
    %c0_i32_0 = arith.constant 0 : i32
    return %arg0, %c0_i32 : i32, i32
  }
  func.func @transform_1(%arg0: i32) -> (i32, i32) {
    %c0_i32 = arith.constant 0 : i32
    %c0_i32_0 = arith.constant 0 : i32
    %c0_i32_1 = arith.constant 0 : i32
    return %c0_i32, %c0_i32_0 : i32, i32
  }
  func.func @transform_2(%arg0: i32) -> (i32, i32) {
    %c0_i32 = arith.constant 0 : i32
    %c0_i32_0 = arith.constant 0 : i32
    return %arg0, %c0_i32 : i32, i32
  }
}

</mosaic_0001>

<llo_original>
// kernel: neg.7
$region0: #{neg.7}
  #allocation0 [shape = 's32[1]{0}', space=sflag, size = 0x4, scoped, tag = 'scoped memory for neg.7']
  %s0 = inlined_call_operand.vmem [shape: f32[16,16,1], index: 0, kind: input, shape index: {}]
  %s1 = inlined_call_operand.vmem [shape: f32[16,16,1], index: 1, kind: output, shape index: {}]
  %v2 = vld [vmem:[%s0] sm:$0xff]
  %3 = xla_tuple %v2
  %4 = xla_tuple %3
  %v5 = vxor.u32 %v2, 2147483648
  %6 = xla_tuple %v5
  %7 = vst [vmem:[%s1] sm:$0xff] %v5
  %s8 = scalar_lea.vmem %s0, 8
  %v9 = vld [vmem:[%s8] sm:$0xff]
  %10 = xla_tuple %v9
  %11 = xla_tuple %10
  %v12 = vxor.u32 %v9, 2147483648
  %13 = xla_tuple %v12
  %s14 = scalar_lea.vmem %s1, 8
  %15 = vst [vmem:[%s14] sm:$0xff] %v12

// kernel: mul.40
$region0: #{mul.40}
  %s0 = inlined_call_operand.vmem [shape: f32[16,2,16,2], index: 0, kind: input, shape index: {}]
  %s1 = inlined_call_operand.vmem [shape: f32[32,32], index: 1, kind: output, shape index: {}]
  %s2 = smov 3
  %v3 = vld [vmem:[%s0] ss:$16 sm:%s2]
  %s4 = smov 12
  %v5 = vld [vmem:[%s0] ss:$16 sm:%s4]
  %vm6 = vcmask 1043458
  %v7 = vsel %vm6, %v5, %v3
  %s8 = smov 48
  %v9 = vld [vmem:[%s0] ss:$16 sm:%s8]
  %vm10 = vcmask 1045508
  %v11 = vsel %vm10, %v9, %v7
  %s12 = smov 192
  %v13 = vld [vmem:[%s0] ss:$16 sm:%s12]
  %vm14 = vcmask 1047558
  %v15 = vsel %vm14, %v13, %v11
  %vm16 = vcmask 15360
  %17 = vst.msk [vmem:[%s1] sm:$0xff] %vm16, %v15
  %s18 = scalar_lea.vmem %s0, 128
  %s19 = smov 3
  %v20 = vld [vmem:[%s18] ss:$16 sm:%s19]
  %s21 = scalar_lea.vmem %s0, 128
  %s22 = smov 12
  %v23 = vld [vmem:[%s21] ss:$16 sm:%s22]
  %vm24 = vcmask 1043458
  %v25 = vsel %vm24, %v23, %v20
  %s26 = scalar_lea.vmem %s0, 128
  %s27 = smov 48
  %v28 = vld [vmem:[%s26] ss:$16 sm:%s27]
  %vm29 = vcmask 1045508
  %v30 = vsel %vm29, %v28, %v25
  %s31 = scalar_lea.vmem %s0, 128
  %s32 = smov 192
  %v33 = vld [vmem:[%s31] ss:$16 sm:%s32]
  %vm34 = vcmask 1047558
  %v35 = vsel %vm34, %v33, %v30
  %vm36 = vcmask 15360
  %s37 = scalar_lea.vmem %s1, 8
  %38 = vst.msk [vmem:[%s37] sm:$0xff] %vm36, %v35
  %s39 = scalar_lea.vmem %s0, 256
  %s40 = smov 3
  %v41 = vld [vmem:[%s39] ss:$16 sm:%s40]
  %s42 = scalar_lea.vmem %s0, 256
  %s43 = smov 12
  %v44 = vld [vmem:[%s42] ss:$16 sm:%s43]
  %vm45 = vcmask 1043458
  %v46 = vsel %vm45, %v44, %v41
  %s47 = scalar_lea.vmem %s0, 256
  %s48 = smov 48
  %v49 = vld [vmem:[%s47] ss:$16 sm:%s48]
  %vm50 = vcmask 1045508
  %v51 = vsel %vm50, %v49, %v46
  %s52 = scalar_lea.vmem %s0, 256
  %s53 = smov 192
  %v54 = vld [vmem:[%s52] ss:$16 sm:%s53]
  %vm55 = vcmask 1047558
  %v56 = vsel %vm55, %v54, %v51
  %vm57 = vcmask 15360
  %s58 = scalar_lea.vmem %s1, 16
  %59 = vst.msk [vmem:[%s58] sm:$0xff] %vm57, %v56
  %s60 = scalar_lea.vmem %s0, 384
  %s61 = smov 3
  %v62 = vld [vmem:[%s60] ss:$16 sm:%s61]
  %s63 = scalar_lea.vmem %s0, 384
  %s64 = smov 12
  %v65 = vld [vmem:[%s63] ss:$16 sm:%s64]
  %vm66 = vcmask 1043458
  %v67 = vsel %vm66, %v65, %v62
  %s68 = scalar_lea.vmem %s0, 384
  %s69 = smov 48
  %v70 = vld [vmem:[%s68] ss:$16 sm:%s69]
  %vm71 = vcmask 1045508
  %v72 = vsel %vm71, %v70, %v67
  %s73 = scalar_lea.vmem %s0, 384
  %s74 = smov 192
  %v75 = vld [vmem:[%s73] ss:$16 sm:%s74]
  %vm76 = vcmask 1047558
  %v77 = vsel %vm76, %v75, %v72
  %vm78 = vcmask 15360
  %s79 = scalar_lea.vmem %s1, 24
  %80 = vst.msk [vmem:[%s79] sm:$0xff] %vm78, %v77
  %s81 = scalar_lea.vmem %s0, 15
  %s82 = smov 3
  %v83 = vld [vmem:[%s81] ss:$16 sm:%s82]
  %s84 = scalar_lea.vmem %s0, 15
  %s85 = smov 12
  %v86 = vld [vmem:[%s84] ss:$16 sm:%s85]
  %vm87 = vcmask 1043458
  %v88 = vsel %vm87, %v86, %v83
  %s89 = scalar_lea.vmem %s0, 15
  %s90 = smov 48
  %v91 = vld [vmem:[%s89] ss:$16 sm:%s90]
  %vm92 = vcmask 1045508
  %v93 = vsel %vm92, %v91, %v88
  %s94 = scalar_lea.vmem %s0, 15
  %s95 = smov 192
  %v96 = vld [vmem:[%s94] ss:$16 sm:%s95]
  %vm97 = vcmask 1047558
  %v98 = vsel %vm97, %v96, %v93
  %99 = vrot.lane.b32.xlu0 %v98, 30
  %v100 = vpop.permute.xlu0 %99
  %vm101 = vcmask 261360
  %102 = vst.msk [vmem:[%s1] sm:$0xff] %vm101, %v100
  %s103 = scalar_lea.vmem %s0, 143
  %s104 = smov 3
  %v105 = vld [vmem:[%s103] ss:$16 sm:%s104]
  %s106 = scalar_lea.vmem %s0, 143
  %s107 = smov 12
  %v108 = vld [vmem:[%s106] ss:$16 sm:%s107]
  %vm109 = vcmask 1043458
  %v110 = vsel %vm109, %v108, %v105
  %s111 = scalar_lea.vmem %s0, 143
  %s112 = smov 48
  %v113 = vld [vmem:[%s111] ss:$16 sm:%s112]
  %vm114 = vcmask 1045508
  %v115 = vsel %vm114, %v113, %v110
  %s116 = scalar_lea.vmem %s0, 143
  %s117 = smov 192
  %v118 = vld [vmem:[%s116] ss:$16 sm:%s117]
  %vm119 = vcmask 1047558
  %v120 = vsel %vm119, %v118, %v115
  %121 = vrot.lane.b32.xlu0 %v120, 30
  %v122 = vpop.permute.xlu0 %121
  %vm123 = vcmask 261360
  %s124 = scalar_lea.vmem %s1, 8
  %125 = vst.msk [vmem:[%s124] sm:$0xff] %vm123, %v122
  %s126 = scalar_lea.vmem %s0, 271
  %s127 = smov 3
  %v128 = vld [vmem:[%s126] ss:$16 sm:%s127]
  %s129 = scalar_lea.vmem %s0, 271
  %s130 = smov 12
  %v131 = vld [vmem:[%s129] ss:$16 sm:%s130]
  %vm132 = vcmask 1043458
  %v133 = vsel %vm132, %v131, %v128
  %s134 = scalar_lea.vmem %s0, 271
  %s135 = smov 48
  %v136 = vld [vmem:[%s134] ss:$16 sm:%s135]
  %vm137 = vcmask 1045508
  %v138 = vsel %vm137, %v136, %v133
  %s139 = scalar_lea.vmem %s0, 271
  %s140 = smov 192
  %v141 = vld [vmem:[%s139] ss:$16 sm:%s140]
  %vm142 = vcmask 1047558
  %v143 = vsel %vm142, %v141, %v138
  %144 = vrot.lane.b32.xlu0 %v143, 30
  %v145 = vpop.permute.xlu0 %144
  %vm146 = vcmask 261360
  %s147 = scalar_lea.vmem %s1, 16
  %148 = vst.msk [vmem:[%s147] sm:$0xff] %vm146, %v145
  %s149 = scalar_lea.vmem %s0, 399
  %s150 = smov 3
  %v151 = vld [vmem:[%s149] ss:$16 sm:%s150]
  %s152 = scalar_lea.vmem %s0, 399
  %s153 = smov 12
  %v154 = vld [vmem:[%s152] ss:$16 sm:%s153]
  %vm155 = vcmask 1043458
  %v156 = vsel %vm155, %v154, %v151
  %s157 = scalar_lea.vmem %s0, 399
  %s158 = smov 48
  %v159 = vld [vmem:[%s157] ss:$16 sm:%s158]
  %vm160 = vcmask 1045508
  %v161 = vsel %vm160, %v159, %v156
  %s162 = scalar_lea.vmem %s0, 399
  %s163 = smov 192
  %v164 = vld [vmem:[%s162] ss:$16 sm:%s163]
  %vm165 = vcmask 1047558
  %v166 = vsel %vm165, %v164, %v161
  %167 = vrot.lane.b32.xlu0 %v166, 30
  %v168 = vpop.permute.xlu0 %167
  %vm169 = vcmask 261360
  %s170 = scalar_lea.vmem %s1, 24
  %171 = vst.msk [vmem:[%s170] sm:$0xff] %vm169, %v168
  %s172 = scalar_lea.vmem %s0, 14
  %s173 = smov 3
  %v174 = vld [vmem:[%s172] ss:$16 sm:%s173]
  %s175 = scalar_lea.vmem %s0, 14
  %s176 = smov 12
  %v177 = vld [vmem:[%s175] ss:$16 sm:%s176]
  %vm178 = vcmask 1043458
  %v179 = vsel %vm178, %v177, %v174
  %s180 = scalar_lea.vmem %s0, 14
  %s181 = smov 48
  %v182 = vld [vmem:[%s180] ss:$16 sm:%s181]
  %vm183 = vcmask 1045508
  %v184 = vsel %vm183, %v182, %v179
  %s185 = scalar_lea.vmem %s0, 14
  %s186 = smov 192
  %v187 = vld [vmem:[%s185] ss:$16 sm:%s186]
  %vm188 = vcmask 1047558
  %v189 = vsel %vm188, %v187, %v184
  %190 = vrot.lane.b32.xlu0 %v189, 28
  %v191 = vpop.permute.xlu0 %190
  %vm192 = vcmask 244960
  %193 = vst.msk [vmem:[%s1] sm:$0xff] %vm192, %v191
  %s194 = scalar_lea.vmem %s0, 142
  %s195 = smov 3
  %v196 = vld [vmem:[%s194] ss:$16 sm:%s195]
  %s197 = scalar_lea.vmem %s0, 142
  %s198 = smov 12
  %v199 = vld [vmem:[%s197] ss:$16 sm:%s198]
  %vm200 = vcmask 1043458
  %v201 = vsel %vm200, %v199, %v196
  %s202 = scalar_lea.vmem %s0, 142
  %s203 = smov 48
  %v204 = vld [vmem:[%s202] ss:$16 sm:%s203]
  %vm205 = vcmask 1045508
  %v206 = vsel %vm205, %v204, %v201
  %s207 = scalar_lea.vmem %s0, 142
  %s208 = smov 192
  %v209 = vld [vmem:[%s207] ss:$16 sm:%s208]
  %vm210 = vcmask 1047558
  %v211 = vsel %vm210, %v209, %v206
  %212 = vrot.lane.b32.xlu0 %v211, 28
  %v213 = vpop.permute.xlu0 %212
  %vm214 = vcmask 244960
  %s215 = scalar_lea.vmem %s1, 8
  %216 = vst.msk [vmem:[%s215] sm:$0xff] %vm214, %v213
  %s217 = scalar_lea.vmem %s0, 270
  %s218 = smov 3
  %v219 = vld [vmem:[%s217] ss:$16 sm:%s218]
  %s220 = scalar_lea.vmem %s0, 270
  %s221 = smov 12
  %v222 = vld [vmem:[%s220] ss:$16 sm:%s221]
  %vm223 = vcmask 1043458
  %v224 = vsel %vm223, %v222, %v219
  %s225 = scalar_lea.vmem %s0, 270
  %s226 = smov 48
  %v227 = vld [vmem:[%s225] ss:$16 sm:%s226]
  %vm228 = vcmask 1045508
  %v229 = vsel %vm228, %v227, %v224
  %s230 = scalar_lea.vmem %s0, 270
  %s231 = smov 192
  %v232 = vld [vmem:[%s230] ss:$16 sm:%s231]
  %vm233 = vcmask 1047558
  %v234 = vsel %vm233, %v232, %v229
  %235 = vrot.lane.b32.xlu0 %v234, 28
  %v236 = vpop.permute.xlu0 %235
  %vm237 = vcmask 244960
  %s238 = scalar_lea.vmem %s1, 16
  %239 = vst.msk [vmem:[%s238] sm:$0xff] %vm237, %v236
  %s240 = scalar_lea.vmem %s0, 398
  %s241 = smov 3
  %v242 = vld [vmem:[%s240] ss:$16 sm:%s241]
  %s243 = scalar_lea.vmem %s0, 398
  %s244 = smov 12
  %v245 = vld [vmem:[%s243] ss:$16 sm:%s244]
  %vm246 = vcmask 1043458
  %v247 = vsel %vm246, %v245, %v242
  %s248 = scalar_lea.vmem %s0, 398
  %s249 = smov 48
  %v250 = vld [vmem:[%s248] ss:$16 sm:%s249]
  %vm251 = vcmask 1045508
  %v252 = vsel %vm251, %v250, %v247
  %s253 = scalar_lea.vmem %s0, 398
  %s254 = smov 192
  %v255 = vld [vmem:[%s253] ss:$16 sm:%s254]
  %vm256 = vcmask 1047558
  %v257 = vsel %vm256, %v255, %v252
  %258 = vrot.lane.b32.xlu0 %v257, 28
  %v259 = vpop.permute.xlu0 %258
  %vm260 = vcmask 244960
  %s261 = scalar_lea.vmem %s1, 24
  %262 = vst.msk [vmem:[%s261] sm:$0xff] %vm260, %v259
  %s263 = scalar_lea.vmem %s0, 13
  %s264 = smov 3
  %v265 = vld [vmem:[%s263] ss:$16 sm:%s264]
  %s266 = scalar_lea.vmem %s0, 13
  %s267 = smov 12
  %v268 = vld [vmem:[%s266] ss:$16 sm:%s267]
  %vm269 = vcmask 1043458
  %v270 = vsel %vm269, %v268, %v265
  %s271 = scalar_lea.vmem %s0, 13
  %s272 = smov 48
  %v273 = vld [vmem:[%s271] ss:$16 sm:%s272]
  %vm274 = vcmask 1045508
  %v275 = vsel %vm274, %v273, %v270
  %s276 = scalar_lea.vmem %s0, 13
  %s277 = smov 192
  %v278 = vld [vmem:[%s276] ss:$16 sm:%s277]
  %vm279 = vcmask 1047558
  %v280 = vsel %vm279, %v278, %v275
  %281 = vrot.lane.b32.xlu0 %v280, 26
  %v282 = vpop.permute.xlu0 %281
  %vm283 = vcmask 228560
  %284 = vst.msk [vmem:[%s1] sm:$0xff] %vm283, %v282
  %s285 = scalar_lea.vmem %s0, 141
  %s286 = smov 3
  %v287 = vld [vmem:[%s285] ss:$16 sm:%s286]
  %s288 = scalar_lea.vmem %s0, 141
  %s289 = smov 12
  %v290 = vld [vmem:[%s288] ss:$16 sm:%s289]
  %vm291 = vcmask 1043458
  %v292 = vsel %vm291, %v290, %v287
  %s293 = scalar_lea.vmem %s0, 141
  %s294 = smov 48
  %v295 = vld [vmem:[%s293] ss:$16 sm:%s294]
  %vm296 = vcmask 1045508
  %v297 = vsel %vm296, %v295, %v292
  %s298 = scalar_lea.vmem %s0, 141
  %s299 = smov 192
  %v300 = vld [vmem:[%s298] ss:$16 sm:%s299]
  %vm301 = vcmask 1047558
  %v302 = vsel %vm301, %v300, %v297
  %303 = vrot.lane.b32.xlu0 %v302, 26
  %v304 = vpop.permute.xlu0 %303
  %vm305 = vcmask 228560
  %s306 = scalar_lea.vmem %s1, 8
  %307 = vst.msk [vmem:[%s306] sm:$0xff] %vm305, %v304
  %s308 = scalar_lea.vmem %s0, 269
  %s309 = smov 3
  %v310 = vld [vmem:[%s308] ss:$16 sm:%s309]
  %s311 = scalar_lea.vmem %s0, 269
  %s312 = smov 12
  %v313 = vld [vmem:[%s311] ss:$16 sm:%s312]
  %vm314 = vcmask 1043458
  %v315 = vsel %vm314, %v313, %v310
  %s316 = scalar_lea.vmem %s0, 269
  %s317 = smov 48
  %v318 = vld [vmem:[%s316] ss:$16 sm:%s317]
  %vm319 = vcmask 1045508
  %v320 = vsel %vm319, %v318, %v315
  %s321 = scalar_lea.vmem %s0, 269
  %s322 = smov 192
  %v323 = vld [vmem:[%s321] ss:$16 sm:%s322]
  %vm324 = vcmask 1047558
  %v325 = vsel %vm324, %v323, %v320
  %326 = vrot.lane.b32.xlu0 %v325, 26
  %v327 = vpop.permute.xlu0 %326
  %vm328 = vcmask 228560
  %s329 = scalar_lea.vmem %s1, 16
  %330 = vst.msk [vmem:[%s329] sm:$0xff] %vm328, %v327
  %s331 = scalar_lea.vmem %s0, 397
  %s332 = smov 3
  %v333 = vld [vmem:[%s331] ss:$16 sm:%s332]
  %s334 = scalar_lea.vmem %s0, 397
  %s335 = smov 12
  %v336 = vld [vmem:[%s334] ss:$16 sm:%s335]
  %vm337 = vcmask 1043458
  %v338 = vsel %vm337, %v336, %v333
  %s339 = scalar_lea.vmem %s0, 397
  %s340 = smov 48
  %v341 = vld [vmem:[%s339] ss:$16 sm:%s340]
  %vm342 = vcmask 1045508
  %v343 = vsel %vm342, %v341, %v338
  %s344 = scalar_lea.vmem %s0, 397
  %s345 = smov 192
  %v346 = vld [vmem:[%s344] ss:$16 sm:%s345]
  %vm347 = vcmask 1047558
  %v348 = vsel %vm347, %v346, %v343
  %349 = vrot.lane.b32.xlu0 %v348, 26
  %v350 = vpop.permute.xlu0 %349
  %vm351 = vcmask 228560
  %s352 = scalar_lea.vmem %s1, 24
  %353 = vst.msk [vmem:[%s352] sm:$0xff] %vm351, %v350
  %s354 = scalar_lea.vmem %s0, 12
  %s355 = smov 3
  %v356 = vld [vmem:[%s354] ss:$16 sm:%s355]
  %s357 = scalar_lea.vmem %s0, 12
  %s358 = smov 12
  %v359 = vld [vmem:[%s357] ss:$16 sm:%s358]
  %vm360 = vcmask 1043458
  %v361 = vsel %vm360, %v359, %v356
  %s362 = scalar_lea.vmem %s0, 12
  %s363 = smov 48
  %v364 = vld [vmem:[%s362] ss:$16 sm:%s363]
  %vm365 = vcmask 1045508
  %v366 = vsel %vm365, %v364, %v361
  %s367 = scalar_lea.vmem %s0, 12
  %s368 = smov 192
  %v369 = vld [vmem:[%s367] ss:$16 sm:%s368]
  %vm370 = vcmask 1047558
  %v371 = vsel %vm370, %v369, %v366
  %372 = vrot.lane.b32.xlu0 %v371, 24
  %v373 = vpop.permute.xlu0 %372
  %vm374 = vcmask 212160
  %375 = vst.msk [vmem:[%s1] sm:$0xff] %vm374, %v373
  %s376 = scalar_lea.vmem %s0, 140
  %s377 = smov 3
  %v378 = vld [vmem:[%s376] ss:$16 sm:%s377]
  %s379 = scalar_lea.vmem %s0, 140
  %s380 = smov 12
  %v381 = vld [vmem:[%s379] ss:$16 sm:%s380]
  %vm382 = vcmask 1043458
  %v383 = vsel %vm382, %v381, %v378
  %s384 = scalar_lea.vmem %s0, 140
  %s385 = smov 48
  %v386 = vld [vmem:[%s384] ss:$16 sm:%s385]
  %vm387 = vcmask 1045508
  %v388 = vsel %vm387, %v386, %v383
  %s389 = scalar_lea.vmem %s0, 140
  %s390 = smov 192
  %v391 = vld [vmem:[%s389] ss:$16 sm:%s390]
  %vm392 = vcmask 1047558
  %v393 = vsel %vm392, %v391, %v388
  %394 = vrot.lane.b32.xlu0 %v393, 24
  %v395 = vpop.permute.xlu0 %394
  %vm396 = vcmask 212160
  %s397 = scalar_lea.vmem %s1, 8
  %398 = vst.msk [vmem:[%s397] sm:$0xff] %vm396, %v395
  %s399 = scalar_lea.vmem %s0, 268
  %s400 = smov 3
  %v401 = vld [vmem:[%s399] ss:$16 sm:%s400]
  %s402 = scalar_lea.vmem %s0, 268
  %s403 = smov 12
  %v404 = vld [vmem:[%s402] ss:$16 sm:%s403]
  %vm405 = vcmask 1043458
  %v406 = vsel %vm405, %v404, %v401
  %s407 = scalar_lea.vmem %s0, 268
  %s408 = smov 48
  %v409 = vld [vmem:[%s407] ss:$16 sm:%s408]
  %vm410 = vcmask 1045508
  %v411 = vsel %vm410, %v409, %v406
  %s412 = scalar_lea.vmem %s0, 268
  %s413 = smov 192
  %v414 = vld [vmem:[%s412] ss:$16 sm:%s413]
  %vm415 = vcmask 1047558
  %v416 = vsel %vm415, %v414, %v411
  %417 = vrot.lane.b32.xlu0 %v416, 24
  %v418 = vpop.permute.xlu0 %417
  %vm419 = vcmask 212160
  %s420 = scalar_lea.vmem %s1, 16
  %421 = vst.msk [vmem:[%s420] sm:$0xff] %vm419, %v418
  %s422 = scalar_lea.vmem %s0, 396
  %s423 = smov 3
  %v424 = vld [vmem:[%s422] ss:$16 sm:%s423]
  %s425 = scalar_lea.vmem %s0, 396
  %s426 = smov 12
  %v427 = vld [vmem:[%s425] ss:$16 sm:%s426]
  %vm428 = vcmask 1043458
  %v429 = vsel %vm428, %v427, %v424
  %s430 = scalar_lea.vmem %s0, 396
  %s431 = smov 48
  %v432 = vld [vmem:[%s430] ss:$16 sm:%s431]
  %vm433 = vcmask 1045508
  %v434 = vsel %vm433, %v432, %v429
  %s435 = scalar_lea.vmem %s0, 396
  %s436 = smov 192
  %v437 = vld [vmem:[%s435] ss:$16 sm:%s436]
  %vm438 = vcmask 1047558
  %v439 = vsel %vm438, %v437, %v434
  %440 = vrot.lane.b32.xlu0 %v439, 24
  %v441 = vpop.permute.xlu0 %440
  %vm442 = vcmask 212160
  %s443 = scalar_lea.vmem %s1, 24
  %444 = vst.msk [vmem:[%s443] sm:$0xff] %vm442, %v441
  %s445 = scalar_lea.vmem %s0, 11
  %s446 = smov 3
  %v447 = vld [vmem:[%s445] ss:$16 sm:%s446]
  %s448 = scalar_lea.vmem %s0, 11
  %s449 = smov 12
  %v450 = vld [vmem:[%s448] ss:$16 sm:%s449]
  %vm451 = vcmask 1043458
  %v452 = vsel %vm451, %v450, %v447
  %s453 = scalar_lea.vmem %s0, 11
  %s454 = smov 48
  %v455 = vld [vmem:[%s453] ss:$16 sm:%s454]
  %vm456 = vcmask 1045508
  %v457 = vsel %vm456, %v455, %v452
  %s458 = scalar_lea.vmem %s0, 11
  %s459 = smov 192
  %v460 = vld [vmem:[%s458] ss:$16 sm:%s459]
  %vm461 = vcmask 1047558
  %v462 = vsel %vm461, %v460, %v457
  %463 = vrot.lane.b32.xlu0 %v462, 22
  %v464 = vpop.permute.xlu0 %463
  %vm465 = vcmask 195760
  %466 = vst.msk [vmem:[%s1] sm:$0xff] %vm465, %v464
  %s467 = scalar_lea.vmem %s0, 139
  %s468 = smov 3
  %v469 = vld [vmem:[%s467] ss:$16 sm:%s468]
  %s470 = scalar_lea.vmem %s0, 139
  %s471 = smov 12
  %v472 = vld [vmem:[%s470] ss:$16 sm:%s471]
  %vm473 = vcmask 1043458
  %v474 = vsel %vm473, %v472, %v469
  %s475 = scalar_lea.vmem %s0, 139
  %s476 = smov 48
  %v477 = vld [vmem:[%s475] ss:$16 sm:%s476]
  %vm478 = vcmask 1045508
  %v479 = vsel %vm478, %v477, %v474
  %s480 = scalar_lea.vmem %s0, 139
  %s481 = smov 192
  %v482 = vld [vmem:[%s480] ss:$16 sm:%s481]
  %vm483 = vcmask 1047558
  %v484 = vsel %vm483, %v482, %v479
  %485 = vrot.lane.b32.xlu0 %v484, 22
  %v486 = vpop.permute.xlu0 %485
  %vm487 = vcmask 195760
  %s488 = scalar_lea.vmem %s1, 8
  %489 = vst.msk [vmem:[%s488] sm:$0xff] %vm487, %v486
  %s490 = scalar_lea.vmem %s0, 267
  %s491 = smov 3
  %v492 = vld [vmem:[%s490] ss:$16 sm:%s491]
  %s493 = scalar_lea.vmem %s0, 267
  %s494 = smov 12
  %v495 = vld [vmem:[%s493] ss:$16 sm:%s494]
  %vm496 = vcmask 1043458
  %v497 = vsel %vm496, %v495, %v492
  %s498 = scalar_lea.vmem %s0, 267
  %s499 = smov 48
  %v500 = vld [vmem:[%s498] ss:$16 sm:%s499]
  %vm501 = vcmask 1045508
  %v502 = vsel %vm501, %v500, %v497
  %s503 = scalar_lea.vmem %s0, 267
  %s504 = smov 192
  %v505 = vld [vmem:[%s503] ss:$16 sm:%s504]
  %vm506 = vcmask 1047558
  %v507 = vsel %vm506, %v505, %v502
  %508 = vrot.lane.b32.xlu0 %v507, 22
  %v509 = vpop.permute.xlu0 %508
  %vm510 = vcmask 195760
  %s511 = scalar_lea.vmem %s1, 16
  %512 = vst.msk [vmem:[%s511] sm:$0xff] %vm510, %v509
  %s513 = scalar_lea.vmem %s0, 395
  %s514 = smov 3
  %v515 = vld [vmem:[%s513] ss:$16 sm:%s514]
  %s516 = scalar_lea.vmem %s0, 395
  %s517 = smov 12
  %v518 = vld [vmem:[%s516] ss:$16 sm:%s517]
  %vm519 = vcmask 1043458
  %v520 = vsel %vm519, %v518, %v515
  %s521 = scalar_lea.vmem %s0, 395
  %s522 = smov 48
  %v523 = vld [vmem:[%s521] ss:$16 sm:%s522]
  %vm524 = vcmask 1045508
  %v525 = vsel %vm524, %v523, %v520
  %s526 = scalar_lea.vmem %s0, 395
  %s527 = smov 192
  %v528 = vld [vmem:[%s526] ss:$16 sm:%s527]
  %vm529 = vcmask 1047558
  %v530 = vsel %vm529, %v528, %v525
  %531 = vrot.lane.b32.xlu0 %v530, 22
  %v532 = vpop.permute.xlu0 %531
  %vm533 = vcmask 195760
  %s534 = scalar_lea.vmem %s1, 24
  %535 = vst.msk [vmem:[%s534] sm:$0xff] %vm533, %v532
  %s536 = scalar_lea.vmem %s0, 10
  %s537 = smov 3
  %v538 = vld [vmem:[%s536] ss:$16 sm:%s537]
  %s539 = scalar_lea.vmem %s0, 10
  %s540 = smov 12
  %v541 = vld [vmem:[%s539] ss:$16 sm:%s540]
  %vm542 = vcmask 1043458
  %v543 = vsel %vm542, %v541, %v538
  %s544 = scalar_lea.vmem %s0, 10
  %s545 = smov 48
  %v546 = vld [vmem:[%s544] ss:$16 sm:%s545]
  %vm547 = vcmask 1045508
  %v548 = vsel %vm547, %v546, %v543
  %s549 = scalar_lea.vmem %s0, 10
  %s550 = smov 192
  %v551 = vld [vmem:[%s549] ss:$16 sm:%s550]
  %vm552 = vcmask 1047558
  %v553 = vsel %vm552, %v551, %v548
  %554 = vrot.lane.b32.xlu0 %v553, 20
  %v555 = vpop.permute.xlu0 %554
  %vm556 = vcmask 179360
  %557 = vst.msk [vmem:[%s1] sm:$0xff] %vm556, %v555
  %s558 = scalar_lea.vmem %s0, 138
  %s559 = smov 3
  %v560 = vld [vmem:[%s558] ss:$16 sm:%s559]
  %s561 = scalar_lea.vmem %s0, 138
  %s562 = smov 12
  %v563 = vld [vmem:[%s561] ss:$16 sm:%s562]
  %vm564 = vcmask 1043458
  %v565 = vsel %vm564, %v563, %v560
  %s566 = scalar_lea.vmem %s0, 138
  %s567 = smov 48
  %v568 = vld [vmem:[%s566] ss:$16 sm:%s567]
  %vm569 = vcmask 1045508
  %v570 = vsel %vm569, %v568, %v565
  %s571 = scalar_lea.vmem %s0, 138
  %s572 = smov 192
  %v573 = vld [vmem:[%s571] ss:$16 sm:%s572]
  %vm574 = vcmask 1047558
  %v575 = vsel %vm574, %v573, %v570
  %576 = vrot.lane.b32.xlu0 %v575, 20
  %v577 = vpop.permute.xlu0 %576
  %vm578 = vcmask 179360
  %s579 = scalar_lea.vmem %s1, 8
  %580 = vst.msk [vmem:[%s579] sm:$0xff] %vm578, %v577
  %s581 = scalar_lea.vmem %s0, 266
  %s582 = smov 3
  %v583 = vld [vmem:[%s581] ss:$16 sm:%s582]
  %s584 = scalar_lea.vmem %s0, 266
  %s585 = smov 12
  %v586 = vld [vmem:[%s584] ss:$16 sm:%s585]
  %vm587 = vcmask 1043458
  %v588 = vsel %vm587, %v586, %v583
  %s589 = scalar_lea.vmem %s0, 266
  %s590 = smov 48
  %v591 = vld [vmem:[%s589] ss:$16 sm:%s590]
  %vm592 = vcmask 1045508
  %v593 = vsel %vm592, %v591, %v588
  %s594 = scalar_lea.vmem %s0, 266
  %s595 = smov 192
  %v596 = vld [vmem:[%s594] ss:$16 sm:%s595]
  %vm597 = vcmask 1047558
  %v598 = vsel %vm597, %v596, %v593
  %599 = vrot.lane.b32.xlu0 %v598, 20
  %v600 = vpop.permute.xlu0 %599
  %vm601 = vcmask 179360
  %s602 = scalar_lea.vmem %s1, 16
  %603 = vst.msk [vmem:[%s602] sm:$0xff] %vm601, %v600
  %s604 = scalar_lea.vmem %s0, 394
  %s605 = smov 3
  %v606 = vld [vmem:[%s604] ss:$16 sm:%s605]
  %s607 = scalar_lea.vmem %s0, 394
  %s608 = smov 12
  %v609 = vld [vmem:[%s607] ss:$16 sm:%s608]
  %vm610 = vcmask 1043458
  %v611 = vsel %vm610, %v609, %v606
  %s612 = scalar_lea.vmem %s0, 394
  %s613 = smov 48
  %v614 = vld [vmem:[%s612] ss:$16 sm:%s613]
  %vm615 = vcmask 1045508
  %v616 = vsel %vm615, %v614, %v611
  %s617 = scalar_lea.vmem %s0, 394
  %s618 = smov 192
  %v619 = vld [vmem:[%s617] ss:$16 sm:%s618]
  %vm620 = vcmask 1047558
  %v621 = vsel %vm620, %v619, %v616
  %622 = vrot.lane.b32.xlu0 %v621, 20
  %v623 = vpop.permute.xlu0 %622
  %vm624 = vcmask 179360
  %s625 = scalar_lea.vmem %s1, 24
  %626 = vst.msk [vmem:[%s625] sm:$0xff] %vm624, %v623
  %s627 = scalar_lea.vmem %s0, 9
  %s628 = smov 3
  %v629 = vld [vmem:[%s627] ss:$16 sm:%s628]
  %s630 = scalar_lea.vmem %s0, 9
  %s631 = smov 12
  %v632 = vld [vmem:[%s630] ss:$16 sm:%s631]
  %vm633 = vcmask 1043458
  %v634 = vsel %vm633, %v632, %v629
  %s635 = scalar_lea.vmem %s0, 9
  %s636 = smov 48
  %v637 = vld [vmem:[%s635] ss:$16 sm:%s636]
  %vm638 = vcmask 1045508
  %v639 = vsel %vm638, %v637, %v634
  %s640 = scalar_lea.vmem %s0, 9
  %s641 = smov 192
  %v642 = vld [vmem:[%s640] ss:$16 sm:%s641]
  %vm643 = vcmask 1047558
  %v644 = vsel %vm643, %v642, %v639
  %645 = vrot.lane.b32.xlu0 %v644, 18
  %v646 = vpop.permute.xlu0 %645
  %vm647 = vcmask 162960
  %648 = vst.msk [vmem:[%s1] sm:$0xff] %vm647, %v646
  %s649 = scalar_lea.vmem %s0, 137
  %s650 = smov 3
  %v651 = vld [vmem:[%s649] ss:$16 sm:%s650]
  %s652 = scalar_lea.vmem %s0, 137
  %s653 = smov 12
  %v654 = vld [vmem:[%s652] ss:$16 sm:%s653]
  %vm655 = vcmask 1043458
  %v656 = vsel %vm655, %v654, %v651
  %s657 = scalar_lea.vmem %s0, 137
  %s658 = smov 48
  %v659 = vld [vmem:[%s657] ss:$16 sm:%s658]
  %vm660 = vcmask 1045508
  %v661 = vsel %vm660, %v659, %v656
  %s662 = scalar_lea.vmem %s0, 137
  %s663 = smov 192
  %v664 = vld [vmem:[%s662] ss:$16 sm:%s663]
  %vm665 = vcmask 1047558
  %v666 = vsel %vm665, %v664, %v661
  %667 = vrot.lane.b32.xlu0 %v666, 18
  %v668 = vpop.permute.xlu0 %667
  %vm669 = vcmask 162960
  %s670 = scalar_lea.vmem %s1, 8
  %671 = vst.msk [vmem:[%s670] sm:$0xff] %vm669, %v668
  %s672 = scalar_lea.vmem %s0, 265
  %s673 = smov 3
  %v674 = vld [vmem:[%s672] ss:$16 sm:%s673]
  %s675 = scalar_lea.vmem %s0, 265
  %s676 = smov 12
  %v677 = vld [vmem:[%s675] ss:$16 sm:%s676]
  %vm678 = vcmask 1043458
  %v679 = vsel %vm678, %v677, %v674
  %s680 = scalar_lea.vmem %s0, 265
  %s681 = smov 48
  %v682 = vld [vmem:[%s680] ss:$16 sm:%s681]
  %vm683 = vcmask 1045508
  %v684 = vsel %vm683, %v682, %v679
  %s685 = scalar_lea.vmem %s0, 265
  %s686 = smov 192
  %v687 = vld [vmem:[%s685] ss:$16 sm:%s686]
  %vm688 = vcmask 1047558
  %v689 = vsel %vm688, %v687, %v684
  %690 = vrot.lane.b32.xlu0 %v689, 18
  %v691 = vpop.permute.xlu0 %690
  %vm692 = vcmask 162960
  %s693 = scalar_lea.vmem %s1, 16
  %694 = vst.msk [vmem:[%s693] sm:$0xff] %vm692, %v691
  %s695 = scalar_lea.vmem %s0, 393
  %s696 = smov 3
  %v697 = vld [vmem:[%s695] ss:$16 sm:%s696]
  %s698 = scalar_lea.vmem %s0, 393
  %s699 = smov 12
  %v700 = vld [vmem:[%s698] ss:$16 sm:%s699]
  %vm701 = vcmask 1043458
  %v702 = vsel %vm701, %v700, %v697
  %s703 = scalar_lea.vmem %s0, 393
  %s704 = smov 48
  %v705 = vld [vmem:[%s703] ss:$16 sm:%s704]
  %vm706 = vcmask 1045508
  %v707 = vsel %vm706, %v705, %v702
  %s708 = scalar_lea.vmem %s0, 393
  %s709 = smov 192
  %v710 = vld [vmem:[%s708] ss:$16 sm:%s709]
  %vm711 = vcmask 1047558
  %v712 = vsel %vm711, %v710, %v707
  %713 = vrot.lane.b32.xlu0 %v712, 18
  %v714 = vpop.permute.xlu0 %713
  %vm715 = vcmask 162960
  %s716 = scalar_lea.vmem %s1, 24
  %717 = vst.msk [vmem:[%s716] sm:$0xff] %vm715, %v714
  %s718 = scalar_lea.vmem %s0, 8
  %s719 = smov 3
  %v720 = vld [vmem:[%s718] ss:$16 sm:%s719]
  %s721 = scalar_lea.vmem %s0, 8
  %s722 = smov 12
  %v723 = vld [vmem:[%s721] ss:$16 sm:%s722]
  %vm724 = vcmask 1043458
  %v725 = vsel %vm724, %v723, %v720
  %s726 = scalar_lea.vmem %s0, 8
  %s727 = smov 48
  %v728 = vld [vmem:[%s726] ss:$16 sm:%s727]
  %vm729 = vcmask 1045508
  %v730 = vsel %vm729, %v728, %v725
  %s731 = scalar_lea.vmem %s0, 8
  %s732 = smov 192
  %v733 = vld [vmem:[%s731] ss:$16 sm:%s732]
  %vm734 = vcmask 1047558
  %v735 = vsel %vm734, %v733, %v730
  %736 = vrot.lane.b32.xlu0 %v735, 16
  %v737 = vpop.permute.xlu0 %736
  %vm738 = vcmask 146560
  %739 = vst.msk [vmem:[%s1] sm:$0xff] %vm738, %v737
  %s740 = scalar_lea.vmem %s0, 136
  %s741 = smov 3
  %v742 = vld [vmem:[%s740] ss:$16 sm:%s741]
  %s743 = scalar_lea.vmem %s0, 136
  %s744 = smov 12
  %v745 = vld [vmem:[%s743] ss:$16 sm:%s744]
  %vm746 = vcmask 1043458
  %v747 = vsel %vm746, %v745, %v742
  %s748 = scalar_lea.vmem %s0, 136
  %s749 = smov 48
  %v750 = vld [vmem:[%s748] ss:$16 sm:%s749]
  %vm751 = vcmask 1045508
  %v752 = vsel %vm751, %v750, %v747
  %s753 = scalar_lea.vmem %s0, 136
  %s754 = smov 192
  %v755 = vld [vmem:[%s753] ss:$16 sm:%s754]
  %vm756 = vcmask 1047558
  %v757 = vsel %vm756, %v755, %v752
  %758 = vrot.lane.b32.xlu0 %v757, 16
  %v759 = vpop.permute.xlu0 %758
  %vm760 = vcmask 146560
  %s761 = scalar_lea.vmem %s1, 8
  %762 = vst.msk [vmem:[%s761] sm:$0xff] %vm760, %v759
  %s763 = scalar_lea.vmem %s0, 264
  %s764 = smov 3
  %v765 = vld [vmem:[%s763] ss:$16 sm:%s764]
  %s766 = scalar_lea.vmem %s0, 264
  %s767 = smov 12
  %v768 = vld [vmem:[%s766] ss:$16 sm:%s767]
  %vm769 = vcmask 1043458
  %v770 = vsel %vm769, %v768, %v765
  %s771 = scalar_lea.vmem %s0, 264
  %s772 = smov 48
  %v773 = vld [vmem:[%s771] ss:$16 sm:%s772]
  %vm774 = vcmask 1045508
  %v775 = vsel %vm774, %v773, %v770
  %s776 = scalar_lea.vmem %s0, 264
  %s777 = smov 192
  %v778 = vld [vmem:[%s776] ss:$16 sm:%s777]
  %vm779 = vcmask 1047558
  %v780 = vsel %vm779, %v778, %v775
  %781 = vrot.lane.b32.xlu0 %v780, 16
  %v782 = vpop.permute.xlu0 %781
  %vm783 = vcmask 146560
  %s784 = scalar_lea.vmem %s1, 16
  %785 = vst.msk [vmem:[%s784] sm:$0xff] %vm783, %v782
  %s786 = scalar_lea.vmem %s0, 392
  %s787 = smov 3
  %v788 = vld [vmem:[%s786] ss:$16 sm:%s787]
  %s789 = scalar_lea.vmem %s0, 392
  %s790 = smov 12
  %v791 = vld [vmem:[%s789] ss:$16 sm:%s790]
  %vm792 = vcmask 1043458
  %v793 = vsel %vm792, %v791, %v788
  %s794 = scalar_lea.vmem %s0, 392
  %s795 = smov 48
  %v796 = vld [vmem:[%s794] ss:$16 sm:%s795]
  %vm797 = vcmask 1045508
  %v798 = vsel %vm797, %v796, %v793
  %s799 = scalar_lea.vmem %s0, 392
  %s800 = smov 192
  %v801 = vld [vmem:[%s799] ss:$16 sm:%s800]
  %vm802 = vcmask 1047558
  %v803 = vsel %vm802, %v801, %v798
  %804 = vrot.lane.b32.xlu0 %v803, 16
  %v805 = vpop.permute.xlu0 %804
  %vm806 = vcmask 146560
  %s807 = scalar_lea.vmem %s1, 24
  %808 = vst.msk [vmem:[%s807] sm:$0xff] %vm806, %v805
  %s809 = scalar_lea.vmem %s0, 7
  %s810 = smov 3
  %v811 = vld [vmem:[%s809] ss:$16 sm:%s810]
  %s812 = scalar_lea.vmem %s0, 7
  %s813 = smov 12
  %v814 = vld [vmem:[%s812] ss:$16 sm:%s813]
  %vm815 = vcmask 1043458
  %v816 = vsel %vm815, %v814, %v811
  %s817 = scalar_lea.vmem %s0, 7
  %s818 = smov 48
  %v819 = vld [vmem:[%s817] ss:$16 sm:%s818]
  %vm820 = vcmask 1045508
  %v821 = vsel %vm820, %v819, %v816
  %s822 = scalar_lea.vmem %s0, 7
  %s823 = smov 192
  %v824 = vld [vmem:[%s822] ss:$16 sm:%s823]
  %vm825 = vcmask 1047558
  %v826 = vsel %vm825, %v824, %v821
  %827 = vrot.lane.b32.xlu0 %v826, 14
  %v828 = vpop.permute.xlu0 %827
  %vm829 = vcmask 130160
  %830 = vst.msk [vmem:[%s1] sm:$0xff] %vm829, %v828
  %s831 = scalar_lea.vmem %s0, 135
  %s832 = smov 3
  %v833 = vld [vmem:[%s831] ss:$16 sm:%s832]
  %s834 = scalar_lea.vmem %s0, 135
  %s835 = smov 12
  %v836 = vld [vmem:[%s834] ss:$16 sm:%s835]
  %vm837 = vcmask 1043458
  %v838 = vsel %vm837, %v836, %v833
  %s839 = scalar_lea.vmem %s0, 135
  %s840 = smov 48
  %v841 = vld [vmem:[%s839] ss:$16 sm:%s840]
  %vm842 = vcmask 1045508
  %v843 = vsel %vm842, %v841, %v838
  %s844 = scalar_lea.vmem %s0, 135
  %s845 = smov 192
  %v846 = vld [vmem:[%s844] ss:$16 sm:%s845]
  %vm847 = vcmask 1047558
  %v848 = vsel %vm847, %v846, %v843
  %849 = vrot.lane.b32.xlu0 %v848, 14
  %v850 = vpop.permute.xlu0 %849
  %vm851 = vcmask 130160
  %s852 = scalar_lea.vmem %s1, 8
  %853 = vst.msk [vmem:[%s852] sm:$0xff] %vm851, %v850
  %s854 = scalar_lea.vmem %s0, 263
  %s855 = smov 3
  %v856 = vld [vmem:[%s854] ss:$16 sm:%s855]
  %s857 = scalar_lea.vmem %s0, 263
  %s858 = smov 12
  %v859 = vld [vmem:[%s857] ss:$16 sm:%s858]
  %vm860 = vcmask 1043458
  %v861 = vsel %vm860, %v859, %v856
  %s862 = scalar_lea.vmem %s0, 263
  %s863 = smov 48
  %v864 = vld [vmem:[%s862] ss:$16 sm:%s863]
  %vm865 = vcmask 1045508
  %v866 = vsel %vm865, %v864, %v861
  %s867 = scalar_lea.vmem %s0, 263
  %s868 = smov 192
  %v869 = vld [vmem:[%s867] ss:$16 sm:%s868]
  %vm870 = vcmask 1047558
  %v871 = vsel %vm870, %v869, %v866
  %872 = vrot.lane.b32.xlu0 %v871, 14
  %v873 = vpop.permute.xlu0 %872
  %vm874 = vcmask 130160
  %s875 = scalar_lea.vmem %s1, 16
  %876 = vst.msk [vmem:[%s875] sm:$0xff] %vm874, %v873
  %s877 = scalar_lea.vmem %s0, 391
  %s878 = smov 3
  %v879 = vld [vmem:[%s877] ss:$16 sm:%s878]
  %s880 = scalar_lea.vmem %s0, 391
  %s881 = smov 12
  %v882 = vld [vmem:[%s880] ss:$16 sm:%s881]
  %vm883 = vcmask 1043458
  %v884 = vsel %vm883, %v882, %v879
  %s885 = scalar_lea.vmem %s0, 391
  %s886 = smov 48
  %v887 = vld [vmem:[%s885] ss:$16 sm:%s886]
  %vm888 = vcmask 1045508
  %v889 = vsel %vm888, %v887, %v884
  %s890 = scalar_lea.vmem %s0, 391
  %s891 = smov 192
  %v892 = vld [vmem:[%s890] ss:$16 sm:%s891]
  %vm893 = vcmask 1047558
  %v894 = vsel %vm893, %v892, %v889
  %895 = vrot.lane.b32.xlu0 %v894, 14
  %v896 = vpop.permute.xlu0 %895
  %vm897 = vcmask 130160
  %s898 = scalar_lea.vmem %s1, 24
  %899 = vst.msk [vmem:[%s898] sm:$0xff] %vm897, %v896
  %s900 = scalar_lea.vmem %s0, 6
  %s901 = smov 3
  %v902 = vld [vmem:[%s900] ss:$16 sm:%s901]
  %s903 = scalar_lea.vmem %s0, 6
  %s904 = smov 12
  %v905 = vld [vmem:[%s903] ss:$16 sm:%s904]
  %vm906 = vcmask 1043458
  %v907 = vsel %vm906, %v905, %v902
  %s908 = scalar_lea.vmem %s0, 6
  %s909 = smov 48
  %v910 = vld [vmem:[%s908] ss:$16 sm:%s909]
  %vm911 = vcmask 1045508
  %v912 = vsel %vm911, %v910, %v907
  %s913 = scalar_lea.vmem %s0, 6
  %s914 = smov 192
  %v915 = vld [vmem:[%s913] ss:$16 sm:%s914]
  %vm916 = vcmask 1047558
  %v917 = vsel %vm916, %v915, %v912
  %918 = vrot.lane.b32.xlu0 %v917, 12
  %v919 = vpop.permute.xlu0 %918
  %vm920 = vcmask 113760
  %921 = vst.msk [vmem:[%s1] sm:$0xff] %vm920, %v919
  %s922 = scalar_lea.vmem %s0, 134
  %s923 = smov 3
  %v924 = vld [vmem:[%s922] ss:$16 sm:%s923]
  %s925 = scalar_lea.vmem %s0, 134
  %s926 = smov 12
  %v927 = vld [vmem:[%s925] ss:$16 sm:%s926]
  %vm928 = vcmask 1043458
  %v929 = vsel %vm928, %v927, %v924
  %s930 = scalar_lea.vmem %s0, 134
  %s931 = smov 48
  %v932 = vld [vmem:[%s930] ss:$16 sm:%s931]
  %vm933 = vcmask 1045508
  %v934 = vsel %vm933, %v932, %v929
  %s935 = scalar_lea.vmem %s0, 134
  %s936 = smov 192
  %v937 = vld [vmem:[%s935] ss:$16 sm:%s936]
  %vm938 = vcmask 1047558
  %v939 = vsel %vm938, %v937, %v934
  %940 = vrot.lane.b32.xlu0 %v939, 12
  %v941 = vpop.permute.xlu0 %940
  %vm942 = vcmask 113760
  %s943 = scalar_lea.vmem %s1, 8
  %944 = vst.msk [vmem:[%s943] sm:$0xff] %vm942, %v941
  %s945 = scalar_lea.vmem %s0, 262
  %s946 = smov 3
  %v947 = vld [vmem:[%s945] ss:$16 sm:%s946]
  %s948 = scalar_lea.vmem %s0, 262
  %s949 = smov 12
  %v950 = vld [vmem:[%s948] ss:$16 sm:%s949]
  %vm951 = vcmask 1043458
  %v952 = vsel %vm951, %v950, %v947
  %s953 = scalar_lea.vmem %s0, 262
  %s954 = smov 48
  %v955 = vld [vmem:[%s953] ss:$16 sm:%s954]
  %vm956 = vcmask 1045508
  %v957 = vsel %vm956, %v955, %v952
  %s958 = scalar_lea.vmem %s0, 262
  %s959 = smov 192
  %v960 = vld [vmem:[%s958] ss:$16 sm:%s959]
  %vm961 = vcmask 1047558
  %v962 = vsel %vm961, %v960, %v957
  %963 = vrot.lane.b32.xlu0 %v962, 12
  %v964 = vpop.permute.xlu0 %963
  %vm965 = vcmask 113760
  %s966 = scalar_lea.vmem %s1, 16
  %967 = vst.msk [vmem:[%s966] sm:$0xff] %vm965, %v964
  %s968 = scalar_lea.vmem %s0, 390
  %s969 = smov 3
  %v970 = vld [vmem:[%s968] ss:$16 sm:%s969]
  %s971 = scalar_lea.vmem %s0, 390
  %s972 = smov 12
  %v973 = vld [vmem:[%s971] ss:$16 sm:%s972]
  %vm974 = vcmask 1043458
  %v975 = vsel %vm974, %v973, %v970
  %s976 = scalar_lea.vmem %s0, 390
  %s977 = smov 48
  %v978 = vld [vmem:[%s976] ss:$16 sm:%s977]
  %vm979 = vcmask 1045508
  %v980 = vsel %vm979, %v978, %v975
  %s981 = scalar_lea.vmem %s0, 390
  %s982 = smov 192
  %v983 = vld [vmem:[%s981] ss:$16 sm:%s982]
  %vm984 = vcmask 1047558
  %v985 = vsel %vm984, %v983, %v980
  %986 = vrot.lane.b32.xlu0 %v985, 12
  %v987 = vpop.permute.xlu0 %986
  %vm988 = vcmask 113760
  %s989 = scalar_lea.vmem %s1, 24
  %990 = vst.msk [vmem:[%s989] sm:$0xff] %vm988, %v987
  %s991 = scalar_lea.vmem %s0, 5
  %s992 = smov 3
  %v993 = vld [vmem:[%s991] ss:$16 sm:%s992]
  %s994 = scalar_lea.vmem %s0, 5
  %s995 = smov 12
  %v996 = vld [vmem:[%s994] ss:$16 sm:%s995]
  %vm997 = vcmask 1043458
  %v998 = vsel %vm997, %v996, %v993
  %s999 = scalar_lea.vmem %s0, 5
  %s1000 = smov 48
  %v1001 = vld [vmem:[%s999] ss:$16 sm:%s1000]
  %vm1002 = vcmask 1045508
  %v1003 = vsel %vm1002, %v1001, %v998
  %s1004 = scalar_lea.vmem %s0, 5
  %s1005 = smov 192
  %v1006 = vld [vmem:[%s1004] ss:$16 sm:%s1005]
  %vm1007 = vcmask 1047558
  %v1008 = vsel %vm1007, %v1006, %v1003
  %1009 = vrot.lane.b32.xlu0 %v1008, 10
  %v1010 = vpop.permute.xlu0 %1009
  %vm1011 = vcmask 97360
  %1012 = vst.msk [vmem:[%s1] sm:$0xff] %vm1011, %v1010
  %s1013 = scalar_lea.vmem %s0, 133
  %s1014 = smov 3
  %v1015 = vld [vmem:[%s1013] ss:$16 sm:%s1014]
  %s1016 = scalar_lea.vmem %s0, 133
  %s1017 = smov 12
  %v1018 = vld [vmem:[%s1016] ss:$16 sm:%s1017]
  %vm1019 = vcmask 1043458
  %v1020 = vsel %vm1019, %v1018, %v1015
  %s1021 = scalar_lea.vmem %s0, 133
  %s1022 = smov 48
  %v1023 = vld [vmem:[%s1021] ss:$16 sm:%s1022]
  %vm1024 = vcmask 1045508
  %v1025 = vsel %vm1024, %v1023, %v1020
  %s1026 = scalar_lea.vmem %s0, 133
  %s1027 = smov 192
  %v1028 = vld [vmem:[%s1026] ss:$16 sm:%s1027]
  %vm1029 = vcmask 1047558
  %v1030 = vsel %vm1029, %v1028, %v1025
  %1031 = vrot.lane.b32.xlu0 %v1030, 10
  %v1032 = vpop.permute.xlu0 %1031
  %vm1033 = vcmask 97360
  %s1034 = scalar_lea.vmem %s1, 8
  %1035 = vst.msk [vmem:[%s1034] sm:$0xff] %vm1033, %v1032
  %s1036 = scalar_lea.vmem %s0, 261
  %s1037 = smov 3
  %v1038 = vld [vmem:[%s1036] ss:$16 sm:%s1037]
  %s1039 = scalar_lea.vmem %s0, 261
  %s1040 = smov 12
  %v1041 = vld [vmem:[%s1039] ss:$16 sm:%s1040]
  %vm1042 = vcmask 1043458
  %v1043 = vsel %vm1042, %v1041, %v1038
  %s1044 = scalar_lea.vmem %s0, 261
  %s1045 = smov 48
  %v1046 = vld [vmem:[%s1044] ss:$16 sm:%s1045]
  %vm1047 = vcmask 1045508
  %v1048 = vsel %vm1047, %v1046, %v1043
  %s1049 = scalar_lea.vmem %s0, 261
  %s1050 = smov 192
  %v1051 = vld [vmem:[%s1049] ss:$16 sm:%s1050]
  %vm1052 = vcmask 1047558
  %v1053 = vsel %vm1052, %v1051, %v1048
  %1054 = vrot.lane.b32.xlu0 %v1053, 10
  %v1055 = vpop.permute.xlu0 %1054
  %vm1056 = vcmask 97360
  %s1057 = scalar_lea.vmem %s1, 16
  %1058 = vst.msk [vmem:[%s1057] sm:$0xff] %vm1056, %v1055
  %s1059 = scalar_lea.vmem %s0, 389
  %s1060 = smov 3
  %v1061 = vld [vmem:[%s1059] ss:$16 sm:%s1060]
  %s1062 = scalar_lea.vmem %s0, 389
  %s1063 = smov 12
  %v1064 = vld [vmem:[%s1062] ss:$16 sm:%s1063]
  %vm1065 = vcmask 1043458
  %v1066 = vsel %vm1065, %v1064, %v1061
  %s1067 = scalar_lea.vmem %s0, 389
  %s1068 = smov 48
  %v1069 = vld [vmem:[%s1067] ss:$16 sm:%s1068]
  %vm1070 = vcmask 1045508
  %v1071 = vsel %vm1070, %v1069, %v1066
  %s1072 = scalar_lea.vmem %s0, 389
  %s1073 = smov 192
  %v1074 = vld [vmem:[%s1072] ss:$16 sm:%s1073]
  %vm1075 = vcmask 1047558
  %v1076 = vsel %vm1075, %v1074, %v1071
  %1077 = vrot.lane.b32.xlu0 %v1076, 10
  %v1078 = vpop.permute.xlu0 %1077
  %vm1079 = vcmask 97360
  %s1080 = scalar_lea.vmem %s1, 24
  %1081 = vst.msk [vmem:[%s1080] sm:$0xff] %vm1079, %v1078
  %s1082 = scalar_lea.vmem %s0, 4
  %s1083 = smov 3
  %v1084 = vld [vmem:[%s1082] ss:$16 sm:%s1083]
  %s1085 = scalar_lea.vmem %s0, 4
  %s1086 = smov 12
  %v1087 = vld [vmem:[%s1085] ss:$16 sm:%s1086]
  %vm1088 = vcmask 1043458
  %v1089 = vsel %vm1088, %v1087, %v1084
  %s1090 = scalar_lea.vmem %s0, 4
  %s1091 = smov 48
  %v1092 = vld [vmem:[%s1090] ss:$16 sm:%s1091]
  %vm1093 = vcmask 1045508
  %v1094 = vsel %vm1093, %v1092, %v1089
  %s1095 = scalar_lea.vmem %s0, 4
  %s1096 = smov 192
  %v1097 = vld [vmem:[%s1095] ss:$16 sm:%s1096]
  %vm1098 = vcmask 1047558
  %v1099 = vsel %vm1098, %v1097, %v1094
  %1100 = vrot.lane.b32.xlu0 %v1099, 8
  %v1101 = vpop.permute.xlu0 %1100
  %vm1102 = vcmask 80960
  %1103 = vst.msk [vmem:[%s1] sm:$0xff] %vm1102, %v1101
  %s1104 = scalar_lea.vmem %s0, 132
  %s1105 = smov 3
  %v1106 = vld [vmem:[%s1104] ss:$16 sm:%s1105]
  %s1107 = scalar_lea.vmem %s0, 132
  %s1108 = smov 12
  %v1109 = vld [vmem:[%s1107] ss:$16 sm:%s1108]
  %vm1110 = vcmask 1043458
  %v1111 = vsel %vm1110, %v1109, %v1106
  %s1112 = scalar_lea.vmem %s0, 132
  %s1113 = smov 48
  %v1114 = vld [vmem:[%s1112] ss:$16 sm:%s1113]
  %vm1115 = vcmask 1045508
  %v1116 = vsel %vm1115, %v1114, %v1111
  %s1117 = scalar_lea.vmem %s0, 132
  %s1118 = smov 192
  %v1119 = vld [vmem:[%s1117] ss:$16 sm:%s1118]
  %vm1120 = vcmask 1047558
  %v1121 = vsel %vm1120, %v1119, %v1116
  %1122 = vrot.lane.b32.xlu0 %v1121, 8
  %v1123 = vpop.permute.xlu0 %1122
  %vm1124 = vcmask 80960
  %s1125 = scalar_lea.vmem %s1, 8
  %1126 = vst.msk [vmem:[%s1125] sm:$0xff] %vm1124, %v1123
  %s1127 = scalar_lea.vmem %s0, 260
  %s1128 = smov 3
  %v1129 = vld [vmem:[%s1127] ss:$16 sm:%s1128]
  %s1130 = scalar_lea.vmem %s0, 260
  %s1131 = smov 12
  %v1132 = vld [vmem:[%s1130] ss:$16 sm:%s1131]
  %vm1133 = vcmask 1043458
  %v1134 = vsel %vm1133, %v1132, %v1129
  %s1135 = scalar_lea.vmem %s0, 260
  %s1136 = smov 48
  %v1137 = vld [vmem:[%s1135] ss:$16 sm:%s1136]
  %vm1138 = vcmask 1045508
  %v1139 = vsel %vm1138, %v1137, %v1134
  %s1140 = scalar_lea.vmem %s0, 260
  %s1141 = smov 192
  %v1142 = vld [vmem:[%s1140] ss:$16 sm:%s1141]
  %vm1143 = vcmask 1047558
  %v1144 = vsel %vm1143, %v1142, %v1139
  %1145 = vrot.lane.b32.xlu0 %v1144, 8
  %v1146 = vpop.permute.xlu0 %1145
  %vm1147 = vcmask 80960
  %s1148 = scalar_lea.vmem %s1, 16
  %1149 = vst.msk [vmem:[%s1148] sm:$0xff] %vm1147, %v1146
  %s1150 = scalar_lea.vmem %s0, 388
  %s1151 = smov 3
  %v1152 = vld [vmem:[%s1150] ss:$16 sm:%s1151]
  %s1153 = scalar_lea.vmem %s0, 388
  %s1154 = smov 12
  %v1155 = vld [vmem:[%s1153] ss:$16 sm:%s1154]
  %vm1156 = vcmask 1043458
  %v1157 = vsel %vm1156, %v1155, %v1152
  %s1158 = scalar_lea.vmem %s0, 388
  %s1159 = smov 48
  %v1160 = vld [vmem:[%s1158] ss:$16 sm:%s1159]
  %vm1161 = vcmask 1045508
  %v1162 = vsel %vm1161, %v1160, %v1157
  %s1163 = scalar_lea.vmem %s0, 388
  %s1164 = smov 192
  %v1165 = vld [vmem:[%s1163] ss:$16 sm:%s1164]
  %vm1166 = vcmask 1047558
  %v1167 = vsel %vm1166, %v1165, %v1162
  %1168 = vrot.lane.b32.xlu0 %v1167, 8
  %v1169 = vpop.permute.xlu0 %1168
  %vm1170 = vcmask 80960
  %s1171 = scalar_lea.vmem %s1, 24
  %1172 = vst.msk [vmem:[%s1171] sm:$0xff] %vm1170, %v1169
  %s1173 = scalar_lea.vmem %s0, 3
  %s1174 = smov 3
  %v1175 = vld [vmem:[%s1173] ss:$16 sm:%s1174]
  %s1176 = scalar_lea.vmem %s0, 3
  %s1177 = smov 12
  %v1178 = vld [vmem:[%s1176] ss:$16 sm:%s1177]
  %vm1179 = vcmask 1043458
  %v1180 = vsel %vm1179, %v1178, %v1175
  %s1181 = scalar_lea.vmem %s0, 3
  %s1182 = smov 48
  %v1183 = vld [vmem:[%s1181] ss:$16 sm:%s1182]
  %vm1184 = vcmask 1045508
  %v1185 = vsel %vm1184, %v1183, %v1180
  %s1186 = scalar_lea.vmem %s0, 3
  %s1187 = smov 192
  %v1188 = vld [vmem:[%s1186] ss:$16 sm:%s1187]
  %vm1189 = vcmask 1047558
  %v1190 = vsel %vm1189, %v1188, %v1185
  %1191 = vrot.lane.b32.xlu0 %v1190, 6
  %v1192 = vpop.permute.xlu0 %1191
  %vm1193 = vcmask 64560
  %1194 = vst.msk [vmem:[%s1] sm:$0xff] %vm1193, %v1192
  %s1195 = scalar_lea.vmem %s0, 131
  %s1196 = smov 3
  %v1197 = vld [vmem:[%s1195] ss:$16 sm:%s1196]
  %s1198 = scalar_lea.vmem %s0, 131
  %s1199 = smov 12
  %v1200 = vld [vmem:[%s1198] ss:$16 sm:%s1199]
  %vm1201 = vcmask 1043458
  %v1202 = vsel %vm1201, %v1200, %v1197
  %s1203 = scalar_lea.vmem %s0, 131
  %s1204 = smov 48
  %v1205 = vld [vmem:[%s1203] ss:$16 sm:%s1204]
  %vm1206 = vcmask 1045508
  %v1207 = vsel %vm1206, %v1205, %v1202
  %s1208 = scalar_lea.vmem %s0, 131
  %s1209 = smov 192
  %v1210 = vld [vmem:[%s1208] ss:$16 sm:%s1209]
  %vm1211 = vcmask 1047558
  %v1212 = vsel %vm1211, %v1210, %v1207
  %1213 = vrot.lane.b32.xlu0 %v1212, 6
  %v1214 = vpop.permute.xlu0 %1213
  %vm1215 = vcmask 64560
  %s1216 = scalar_lea.vmem %s1, 8
  %1217 = vst.msk [vmem:[%s1216] sm:$0xff] %vm1215, %v1214
  %s1218 = scalar_lea.vmem %s0, 259
  %s1219 = smov 3
  %v1220 = vld [vmem:[%s1218] ss:$16 sm:%s1219]
  %s1221 = scalar_lea.vmem %s0, 259
  %s1222 = smov 12
  %v1223 = vld [vmem:[%s1221] ss:$16 sm:%s1222]
  %vm1224 = vcmask 1043458
  %v1225 = vsel %vm1224, %v1223, %v1220
  %s1226 = scalar_lea.vmem %s0, 259
  %s1227 = smov 48
  %v1228 = vld [vmem:[%s1226] ss:$16 sm:%s1227]
  %vm1229 = vcmask 1045508
  %v1230 = vsel %vm1229, %v1228, %v1225
  %s1231 = scalar_lea.vmem %s0, 259
  %s1232 = smov 192
  %v1233 = vld [vmem:[%s1231] ss:$16 sm:%s1232]
  %vm1234 = vcmask 1047558
  %v1235 = vsel %vm1234, %v1233, %v1230
  %1236 = vrot.lane.b32.xlu0 %v1235, 6
  %v1237 = vpop.permute.xlu0 %1236
  %vm1238 = vcmask 64560
  %s1239 = scalar_lea.vmem %s1, 16
  %1240 = vst.msk [vmem:[%s1239] sm:$0xff] %vm1238, %v1237
  %s1241 = scalar_lea.vmem %s0, 387
  %s1242 = smov 3
  %v1243 = vld [vmem:[%s1241] ss:$16 sm:%s1242]
  %s1244 = scalar_lea.vmem %s0, 387
  %s1245 = smov 12
  %v1246 = vld [vmem:[%s1244] ss:$16 sm:%s1245]
  %vm1247 = vcmask 1043458
  %v1248 = vsel %vm1247, %v1246, %v1243
  %s1249 = scalar_lea.vmem %s0, 387
  %s1250 = smov 48
  %v1251 = vld [vmem:[%s1249] ss:$16 sm:%s1250]
  %vm1252 = vcmask 1045508
  %v1253 = vsel %vm1252, %v1251, %v1248
  %s1254 = scalar_lea.vmem %s0, 387
  %s1255 = smov 192
  %v1256 = vld [vmem:[%s1254] ss:$16 sm:%s1255]
  %vm1257 = vcmask 1047558
  %v1258 = vsel %vm1257, %v1256, %v1253
  %1259 = vrot.lane.b32.xlu0 %v1258, 6
  %v1260 = vpop.permute.xlu0 %1259
  %vm1261 = vcmask 64560
  %s1262 = scalar_lea.vmem %s1, 24
  %1263 = vst.msk [vmem:[%s1262] sm:$0xff] %vm1261, %v1260
  %s1264 = scalar_lea.vmem %s0, 2
  %s1265 = smov 3
  %v1266 = vld [vmem:[%s1264] ss:$16 sm:%s1265]
  %s1267 = scalar_lea.vmem %s0, 2
  %s1268 = smov 12
  %v1269 = vld [vmem:[%s1267] ss:$16 sm:%s1268]
  %vm1270 = vcmask 1043458
  %v1271 = vsel %vm1270, %v1269, %v1266
  %s1272 = scalar_lea.vmem %s0, 2
  %s1273 = smov 48
  %v1274 = vld [vmem:[%s1272] ss:$16 sm:%s1273]
  %vm1275 = vcmask 1045508
  %v1276 = vsel %vm1275, %v1274, %v1271
  %s1277 = scalar_lea.vmem %s0, 2
  %s1278 = smov 192
  %v1279 = vld [vmem:[%s1277] ss:$16 sm:%s1278]
  %vm1280 = vcmask 1047558
  %v1281 = vsel %vm1280, %v1279, %v1276
  %1282 = vrot.lane.b32.xlu0 %v1281, 4
  %v1283 = vpop.permute.xlu0 %1282
  %vm1284 = vcmask 48160
  %1285 = vst.msk [vmem:[%s1] sm:$0xff] %vm1284, %v1283
  %s1286 = scalar_lea.vmem %s0, 130
  %s1287 = smov 3
  %v1288 = vld [vmem:[%s1286] ss:$16 sm:%s1287]
  %s1289 = scalar_lea.vmem %s0, 130
  %s1290 = smov 12
  %v1291 = vld [vmem:[%s1289] ss:$16 sm:%s1290]
  %vm1292 = vcmask 1043458
  %v1293 = vsel %vm1292, %v1291, %v1288
  %s1294 = scalar_lea.vmem %s0, 130
  %s1295 = smov 48
  %v1296 = vld [vmem:[%s1294] ss:$16 sm:%s1295]
  %vm1297 = vcmask 1045508
  %v1298 = vsel %vm1297, %v1296, %v1293
  %s1299 = scalar_lea.vmem %s0, 130
  %s1300 = smov 192
  %v1301 = vld [vmem:[%s1299] ss:$16 sm:%s1300]
  %vm1302 = vcmask 1047558
  %v1303 = vsel %vm1302, %v1301, %v1298
  %1304 = vrot.lane.b32.xlu0 %v1303, 4
  %v1305 = vpop.permute.xlu0 %1304
  %vm1306 = vcmask 48160
  %s1307 = scalar_lea.vmem %s1, 8
  %1308 = vst.msk [vmem:[%s1307] sm:$0xff] %vm1306, %v1305
  %s1309 = scalar_lea.vmem %s0, 258
  %s1310 = smov 3
  %v1311 = vld [vmem:[%s1309] ss:$16 sm:%s1310]
  %s1312 = scalar_lea.vmem %s0, 258
  %s1313 = smov 12
  %v1314 = vld [vmem:[%s1312] ss:$16 sm:%s1313]
  %vm1315 = vcmask 1043458
  %v1316 = vsel %vm1315, %v1314, %v1311
  %s1317 = scalar_lea.vmem %s0, 258
  %s1318 = smov 48
  %v1319 = vld [vmem:[%s1317] ss:$16 sm:%s1318]
  %vm1320 = vcmask 1045508
  %v1321 = vsel %vm1320, %v1319, %v1316
  %s1322 = scalar_lea.vmem %s0, 258
  %s1323 = smov 192
  %v1324 = vld [vmem:[%s1322] ss:$16 sm:%s1323]
  %vm1325 = vcmask 1047558
  %v1326 = vsel %vm1325, %v1324, %v1321
  %1327 = vrot.lane.b32.xlu0 %v1326, 4
  %v1328 = vpop.permute.xlu0 %1327
  %vm1329 = vcmask 48160
  %s1330 = scalar_lea.vmem %s1, 16
  %1331 = vst.msk [vmem:[%s1330] sm:$0xff] %vm1329, %v1328
  %s1332 = scalar_lea.vmem %s0, 386
  %s1333 = smov 3
  %v1334 = vld [vmem:[%s1332] ss:$16 sm:%s1333]
  %s1335 = scalar_lea.vmem %s0, 386
  %s1336 = smov 12
  %v1337 = vld [vmem:[%s1335] ss:$16 sm:%s1336]
  %vm1338 = vcmask 1043458
  %v1339 = vsel %vm1338, %v1337, %v1334
  %s1340 = scalar_lea.vmem %s0, 386
  %s1341 = smov 48
  %v1342 = vld [vmem:[%s1340] ss:$16 sm:%s1341]
  %vm1343 = vcmask 1045508
  %v1344 = vsel %vm1343, %v1342, %v1339
  %s1345 = scalar_lea.vmem %s0, 386
  %s1346 = smov 192
  %v1347 = vld [vmem:[%s1345] ss:$16 sm:%s1346]
  %vm1348 = vcmask 1047558
  %v1349 = vsel %vm1348, %v1347, %v1344
  %1350 = vrot.lane.b32.xlu0 %v1349, 4
  %v1351 = vpop.permute.xlu0 %1350
  %vm1352 = vcmask 48160
  %s1353 = scalar_lea.vmem %s1, 24
  %1354 = vst.msk [vmem:[%s1353] sm:$0xff] %vm1352, %v1351
  %s1355 = scalar_lea.vmem %s0, 1
  %s1356 = smov 3
  %v1357 = vld [vmem:[%s1355] ss:$16 sm:%s1356]
  %s1358 = scalar_lea.vmem %s0, 1
  %s1359 = smov 12
  %v1360 = vld [vmem:[%s1358] ss:$16 sm:%s1359]
  %vm1361 = vcmask 1043458
  %v1362 = vsel %vm1361, %v1360, %v1357
  %s1363 = scalar_lea.vmem %s0, 1
  %s1364 = smov 48
  %v1365 = vld [vmem:[%s1363] ss:$16 sm:%s1364]
  %vm1366 = vcmask 1045508
  %v1367 = vsel %vm1366, %v1365, %v1362
  %s1368 = scalar_lea.vmem %s0, 1
  %s1369 = smov 192
  %v1370 = vld [vmem:[%s1368] ss:$16 sm:%s1369]
  %vm1371 = vcmask 1047558
  %v1372 = vsel %vm1371, %v1370, %v1367
  %1373 = vrot.lane.b32.xlu0 %v1372, 2
  %v1374 = vpop.permute.xlu0 %1373
  %vm1375 = vcmask 31760
  %1376 = vst.msk [vmem:[%s1] sm:$0xff] %vm1375, %v1374
  %s1377 = scalar_lea.vmem %s0, 129
  %s1378 = smov 3
  %v1379 = vld [vmem:[%s1377] ss:$16 sm:%s1378]
  %s1380 = scalar_lea.vmem %s0, 129
  %s1381 = smov 12
  %v1382 = vld [vmem:[%s1380] ss:$16 sm:%s1381]
  %vm1383 = vcmask 1043458
  %v1384 = vsel %vm1383, %v1382, %v1379
  %s1385 = scalar_lea.vmem %s0, 129
  %s1386 = smov 48
  %v1387 = vld [vmem:[%s1385] ss:$16 sm:%s1386]
  %vm1388 = vcmask 1045508
  %v1389 = vsel %vm1388, %v1387, %v1384
  %s1390 = scalar_lea.vmem %s0, 129
  %s1391 = smov 192
  %v1392 = vld [vmem:[%s1390] ss:$16 sm:%s1391]
  %vm1393 = vcmask 1047558
  %v1394 = vsel %vm1393, %v1392, %v1389
  %1395 = vrot.lane.b32.xlu0 %v1394, 2
  %v1396 = vpop.permute.xlu0 %1395
  %vm1397 = vcmask 31760
  %s1398 = scalar_lea.vmem %s1, 8
  %1399 = vst.msk [vmem:[%s1398] sm:$0xff] %vm1397, %v1396
  %s1400 = scalar_lea.vmem %s0, 257
  %s1401 = smov 3
  %v1402 = vld [vmem:[%s1400] ss:$16 sm:%s1401]
  %s1403 = scalar_lea.vmem %s0, 257
  %s1404 = smov 12
  %v1405 = vld [vmem:[%s1403] ss:$16 sm:%s1404]
  %vm1406 = vcmask 1043458
  %v1407 = vsel %vm1406, %v1405, %v1402
  %s1408 = scalar_lea.vmem %s0, 257
  %s1409 = smov 48
  %v1410 = vld [vmem:[%s1408] ss:$16 sm:%s1409]
  %vm1411 = vcmask 1045508
  %v1412 = vsel %vm1411, %v1410, %v1407
  %s1413 = scalar_lea.vmem %s0, 257
  %s1414 = smov 192
  %v1415 = vld [vmem:[%s1413] ss:$16 sm:%s1414]
  %vm1416 = vcmask 1047558
  %v1417 = vsel %vm1416, %v1415, %v1412
  %1418 = vrot.lane.b32.xlu0 %v1417, 2
  %v1419 = vpop.permute.xlu0 %1418
  %vm1420 = vcmask 31760
  %s1421 = scalar_lea.vmem %s1, 16
  %1422 = vst.msk [vmem:[%s1421] sm:$0xff] %vm1420, %v1419
  %s1423 = scalar_lea.vmem %s0, 385
  %s1424 = smov 3
  %v1425 = vld [vmem:[%s1423] ss:$16 sm:%s1424]
  %s1426 = scalar_lea.vmem %s0, 385
  %s1427 = smov 12
  %v1428 = vld [vmem:[%s1426] ss:$16 sm:%s1427]
  %vm1429 = vcmask 1043458
  %v1430 = vsel %vm1429, %v1428, %v1425
  %s1431 = scalar_lea.vmem %s0, 385
  %s1432 = smov 48
  %v1433 = vld [vmem:[%s1431] ss:$16 sm:%s1432]
  %vm1434 = vcmask 1045508
  %v1435 = vsel %vm1434, %v1433, %v1430
  %s1436 = scalar_lea.vmem %s0, 385
  %s1437 = smov 192
  %v1438 = vld [vmem:[%s1436] ss:$16 sm:%s1437]
  %vm1439 = vcmask 1047558
  %v1440 = vsel %vm1439, %v1438, %v1435
  %1441 = vrot.lane.b32.xlu0 %v1440, 2
  %v1442 = vpop.permute.xlu0 %1441
  %vm1443 = vcmask 31760
  %s1444 = scalar_lea.vmem %s1, 24
  %1445 = vst.msk [vmem:[%s1444] sm:$0xff] %vm1443, %v1442

// kernel: custom-call
$region0: #{custom-call}
  %s0 = inlined_call_operand.hbm [shape: c64[2,3,16,1], index: 0, kind: input, shape index: {}]
  %s1 = inlined_call_operand.vmem [shape: f32[2,3,16,1], index: 1, kind: output, shape index: {}]
  $region1: #{custom-call} parent=0
    #allocation0 [shape = 's32[1]{0}', space=sflag, size = 0x4, scoped, tag = 'scoped memory for custom-call']
    %2 = vsyncpa [#allocation0], 0
    %s3 = sshll.u32 %s1, 4
    %s4 = int_to_ptr.vmem [resolvable:$true] %s3
    %6 = dma.hbm_to_vmem [thread:$0]  %s0, 96, %s4, [#allocation0]
    %7 = dma.done [#allocation0], 96
    %8 = vsyncpa [#allocation0], 1

// kernel: custom-call.1
$region0: #{custom-call.1}
  %s0 = inlined_call_operand.hbm [shape: c64[2,3,16,1], index: 0, kind: input, shape index: {}]
  %s1 = inlined_call_operand.vmem [shape: f32[2,3,16,1], index: 1, kind: output, shape index: {}]
  %s2 = scalar_lea.hbm %s0, 96
  $region1: #{custom-call.1} parent=0
    #allocation0 [shape = 's32[1]{0}', space=sflag, size = 0x4, scoped, tag = 'scoped memory for custom-call.1']
    %3 = vsyncpa [#allocation0], 0
    %s4 = sshll.u32 %s1, 4
    %s5 = int_to_ptr.vmem [resolvable:$true] %s4
    %7 = dma.hbm_to_vmem [thread:$0]  %s2, 96, %s5, [#allocation0]
    %8 = dma.done [#allocation0], 96
    %9 = vsyncpa [#allocation0], 1

// kernel: custom-call.2
$region0: #{custom-call.2}
  %s0 = inlined_call_operand.vmem [shape: f32[2,3,16,1], index: 0, kind: input, shape index: {}]
  %s1 = inlined_call_operand.vmem [shape: f32[2,3,16,1], index: 1, kind: input, shape index: {}]
  %s2 = inlined_call_operand.vmem [shape: c64[2,3,16,1], index: 2, kind: output, shape index: {}]
  %s4 = scalar_lea.vmem %s2, 8
  %v5 = vld [vmem:[%s0] sm:$0xff]
  %6 = vst [vmem:[%s2] sm:$0xff] %v5
  %v7 = vld [vmem:[%s1] sm:$0xff]
  %8 = vst [vmem:[%s4] sm:$0xff] %v7

// kernel: rx_layer_forward.1
$region0: #{rx_layer_forward.1}
  #allocation0 [shape = 'u32[]', space=smem, size = 0x4, offset = 0x4, fixed_abs, tag = 'smem constant byte address 0x4 - core index']
  #allocation1 [shape = 'u32[144,128]{1,0:T(1,128)}', space=vmem, size = 0x12000, scoped, tag = 'internal scratch']
  %s0 = inlined_call_operand.vmem [shape: f32[8,128], index: 0, kind: input, shape index: {}]
  %s1 = inlined_call_operand.vmem [shape: f32[128,128], index: 1, kind: input, shape index: {}]
  %s2 = inlined_call_operand.vmem [shape: f32[8,128], index: 2, kind: output, shape index: {}]
  %s3 = sld [smem:[#allocation0]]
  $region18: #{rx_layer_forward.1} parent=0
    _
  %s5 = ssub.s32 1, %s3
  %s6 = scalar_select 0, %s5, %s3
  // Predicated region
  $region2: #{rx_layer_forward.1} parent=0 // pred_check
    _
  $region3: #{rx_layer_forward.1} parent=0 // pred_check_branch
    %8 = sbr.rel (0) target = $region5
  $region4: #{rx_layer_forward.1} parent=0 // pred_region
    _
  $region5: #{rx_layer_forward.1} parent=0 // pred_fallthru
    _
  // Predicated region
  $region6: #{rx_layer_forward.1} parent=0 // pred_check
    _
  $region7: #{rx_layer_forward.1} parent=0 // pred_check_branch
    %10 = sbr.rel (0) target = $region9
  $region8: #{rx_layer_forward.1} parent=0 // pred_region
    _
  $region9: #{rx_layer_forward.1} parent=0 // pred_fallthru
    _
  %v11 = vld [vmem:[%s0] sm:$0xff]
  %v12 = vld [vmem:[%s1] sm:$0xff]
  %v13 = vld [vmem:[%s1 + $0x8] sm:$0xff]
  %v14 = vld [vmem:[%s1 + $0x10] sm:$0xff]
  %v15 = vld [vmem:[%s1 + $0x18] sm:$0xff]
  %v16 = vld [vmem:[%s1 + $0x20] sm:$0xff]
  %v17 = vld [vmem:[%s1 + $0x28] sm:$0xff]
  %v18 = vld [vmem:[%s1 + $0x30] sm:$0xff]
  %v19 = vld [vmem:[%s1 + $0x38] sm:$0xff]
  %v20 = vld [vmem:[%s1 + $0x40] sm:$0xff]
  %v21 = vld [vmem:[%s1 + $0x48] sm:$0xff]
  %v22 = vld [vmem:[%s1 + $0x50] sm:$0xff]
  %v23 = vld [vmem:[%s1 + $0x58] sm:$0xff]
  %v24 = vld [vmem:[%s1 + $0x60] sm:$0xff]
  %v25 = vld [vmem:[%s1 + $0x68] sm:$0xff]
  %v26 = vld [vmem:[%s1 + $0x70] sm:$0xff]
  %v27 = vld [vmem:[%s1 + $0x78] sm:$0xff]
  %28 = vmatprep.subr.mxu0 0.0
  %29 = vmatpush1.msra.mxu0 %v12
  %30 = vmatprep.subr.mxu0 0.0
  %31 = vmatpush1.msra.mxu0 %v13
  %32 = vmatprep.subr.mxu0 0.0
  %33 = vmatpush1.msra.mxu0 %v14
  %34 = vmatprep.subr.mxu0 0.0
  %35 = vmatpush1.msra.mxu0 %v15
  %36 = vmatprep.subr.mxu0 0.0
  %37 = vmatpush1.msra.mxu0 %v16
  %38 = vmatprep.subr.mxu0 0.0
  %39 = vmatpush1.msra.mxu0 %v17
  %40 = vmatprep.subr.mxu0 0.0
  %41 = vmatpush1.msra.mxu0 %v18
  %42 = vmatprep.subr.mxu0 0.0
  %43 = vmatpush1.msra.mxu0 %v19
  %44 = vmatprep.subr.mxu0 0.0
  %45 = vmatpush1.msra.mxu0 %v20
  %46 = vmatprep.subr.mxu0 0.0
  %47 = vmatpush1.msra.mxu0 %v21
  %48 = vmatprep.subr.mxu0 0.0
  %49 = vmatpush1.msra.mxu0 %v22
  %50 = vmatprep.subr.mxu0 0.0
  %51 = vmatpush1.msra.mxu0 %v23
  %52 = vmatprep.subr.mxu0 0.0
  %53 = vmatpush1.msra.mxu0 %v24
  %54 = vmatprep.subr.mxu0 0.0
  %55 = vmatpush1.msra.mxu0 %v25
  %56 = vmatprep.subr.mxu0 0.0
  %57 = vmatpush1.msra.mxu0 %v26
  %58 = vmatprep.subr.mxu0 0.0
  %59 = vmatpush1.msra.mxu0 %v27
  %60 = vmatprep.subr.mxu0 0.0
  %61 = vmatpush1.msra.mxu0 0.0
  %62 = vmatprep.subr.mxu0 0.0
  %63 = vmatpush1.msra.mxu0 0.0
  %64 = vmatprep.subr.mxu0 0.0
  %65 = vmatpush1.msra.mxu0 0.0
  %66 = vmatprep.subr.mxu0 0.0
  %67 = vmatpush1.msra.mxu0 0.0
  %68 = vmatprep.subr.mxu0 0.0
  %69 = vmatpush1.msra.mxu0 0.0
  %70 = vmatprep.subr.mxu0 0.0
  %71 = vmatpush1.msra.mxu0 0.0
  %72 = vmatprep.subr.mxu0 0.0
  %73 = vmatpush1.msra.mxu0 0.0
  %74 = vmatprep.subr.mxu0 0.0
  %75 = vmatpush1.msra.mxu0 0.0
  %76 = vmatprep.subr.mxu0 0.0
  %77 = vmatpush1.msra.mxu0 0.0
  %78 = vmatprep.subr.mxu0 0.0
  %79 = vmatpush1.msra.mxu0 0.0
  %80 = vmatprep.subr.mxu0 0.0
  %81 = vmatpush1.msra.mxu0 0.0
  %82 = vmatprep.subr.mxu0 0.0
  %83 = vmatpush1.msra.mxu0 0.0
  %84 = vmatprep.subr.mxu0 0.0
  %85 = vmatpush1.msra.mxu0 0.0
  %86 = vmatprep.subr.mxu0 0.0
  %87 = vmatpush1.msra.mxu0 0.0
  %88 = vmatprep.subr.mxu0 0.0
  %89 = vmatpush1.msra.mxu0 0.0
  %90 = vmatprep.subr.mxu0 0.0
  %91 = vmatpush1.msra.mxu0 0.0
  %92 = vmatprep.mubr.f32.mxu0 0.0
  %93 = vmatmul.mubr.f32.gmra.mrb[0].mxu0 %v11
  %v94 = vpop.f32.mrb[0].mxu0
  %v95 = vadd.f32 0.0, %v94
  %v96 = vpop.f32.mrb[0].mxu0
  %97 = vdwg.mxu0
  %98 = vst [vmem:[%s2] sm:$0xff] %v95
  // Predicated region
  $region10: #{rx_layer_forward.1} parent=0 // pred_check
    _
  $region11: #{rx_layer_forward.1} parent=0 // pred_check_branch
    %100 = sbr.rel (0) target = $region13
  $region12: #{rx_layer_forward.1} parent=0 // pred_region
    _
  $region13: #{rx_layer_forward.1} parent=0 // pred_fallthru
    _
  // Predicated region
  $region14: #{rx_layer_forward.1} parent=0 // pred_check
    _
  $region15: #{rx_layer_forward.1} parent=0 // pred_check_branch
    %102 = sbr.rel (0) target = $region17
  $region16: #{rx_layer_forward.1} parent=0 // pred_region
    _
  $region17: #{rx_layer_forward.1} parent=0 // pred_fallthru
    _

</llo_original>
